<compile_context>
chip_gen: v5e
topology: v5e:2x2
jax: 0.10.0
libtpu: 0.0.40
codegen_flags: <defaults>
</compile_context>

<pallas_src>
import functools

import jax
import jax.numpy as jnp
from jax.experimental import pallas as pl
from jax.experimental.pallas import tpu as pltpu

LANE = 128          # lane width: pad the tiny class dim to one full vreg width
SUBLANE = 8         # sublane granularity for batch tiles
NEG_BIG = -1e30     # finite "-inf" bias for padded logit lanes (exp -> 0, no NaNs)
TILE_M_CAP = 4096   # max rows per grid step (sweepable; multiple of 8)


# ----------------------------------------------------------------------------
# Fused kernel: o = log_softmax(x @ w + b), math over 128 padded lanes in VMEM,
# narrow (tile_m, outputs) store back to HBM.
# ----------------------------------------------------------------------------
def logreg_kernel(x_ref, w_ref, b_ref, o_ref):
    # (tile_m, feats) @ (feats, 128) on the MXU with f32 accumulation.
    logits = jnp.dot(x_ref[...], w_ref[...], preferred_element_type=jnp.float32)
    logits = logits + b_ref[...]
    # Numerically stable log_softmax across the full 128-lane vreg; padded
    # lanes hold NEG_BIG bias so they never win the max and contribute ~0.
    m = jnp.max(logits, axis=-1, keepdims=True)
    z = logits - m
    lse = jnp.log(jnp.sum(jnp.exp(z), axis=-1, keepdims=True))
    # Only the real class columns are written to HBM.
    o_ref[...] = (z - lse)[:, : o_ref.shape[-1]].astype(o_ref.dtype)


def _round_down(x, m):
    return (x // m) * m


def _choose_tile_m(n):
    """Batch-tile rows per grid step.

    - n <= 8: single full-extent block (legal: equals the array dim).
    - otherwise: a multiple of 8, capped at TILE_M_CAP, and no larger than
      ~n/2 so there are >=2 grid steps for v7x's two TensorCores.
    Ragged last blocks are handled by Pallas's boundary masking (no jnp.pad).
    """
    if n <= SUBLANE:
        return n
    half = max(SUBLANE, _round_down((n + 1) // 2, SUBLANE))
    return max(SUBLANE, min(TILE_M_CAP, half, _round_down(n, SUBLANE)))


# ----------------------------------------------------------------------------
# One-time parameter prep (outside jit): transpose fc1 and pad to 128 lanes.
# ----------------------------------------------------------------------------
def prepare_params(params):
    w = params["w_fc1"]                      # [outputs, feats]  (PyTorch layout)
    b = params["b_fc1"]                      # [outputs]
    outputs, feats = w.shape
    assert outputs <= LANE, f"outputs={outputs} exceeds lane padding {LANE}"
    w_p = (
        jnp.zeros((feats, LANE), jnp.float32)
        .at[:, :outputs]
        .set(w.T.astype(jnp.float32))
    )
    b_p = (
        jnp.full((1, LANE), NEG_BIG, jnp.float32)
        .at[0, :outputs]
        .set(b.astype(jnp.float32))
    )
    return w_p, b_p, outputs, feats


# ----------------------------------------------------------------------------
# Forward: flatten(1) -> fused Pallas kernel -> narrow (n, outputs) result.
# ----------------------------------------------------------------------------
def logreg_forward(x, w_p, b_p, outputs):
    n = x.shape[0]
    feats = w_p.shape[0]
    x2 = x.reshape(n, -1)                    # torch.flatten(x, 1); native dtype
    assert x2.shape[1] == feats, (x2.shape, feats)

    tile_m = _choose_tile_m(n)
    grid = (pl.cdiv(n, tile_m),)             # ragged last block -> masked writes

    out = pl.pallas_call(
        logreg_kernel,
        grid=grid,
        in_specs=[
            pl.BlockSpec((tile_m, feats), lambda i: (i, 0)),  # batch tile of x
            pl.BlockSpec((feats, LANE), lambda i: (0, 0)),    # weights resident
            pl.BlockSpec((1, LANE), lambda i: (0, 0)),        # bias resident
        ],
        out_specs=pl.BlockSpec((tile_m, outputs), lambda i: (i, 0)),
        out_shape=jax.ShapeDtypeStruct((n, outputs), jnp.float32),
        compiler_params=pltpu.CompilerParams(
            dimension_semantics=("parallel",)  # shard batch tiles across TCs (v7x)
        ),
    )(x2, w_p, b_p)

    return out


def init_params(key, outputs=2, feats=64):
    k_w, k_b = jax.random.split(key)
    scale = 0.1
    return {
        "w_fc1": scale * jax.random.normal(k_w, (outputs, feats), jnp.float32),
        "b_fc1": scale * jax.random.normal(k_b, (outputs,), jnp.float32),
    }


if __name__ == "__main__":
    key = jax.random.PRNGKey(0)
    k_param, k_x, k_x2 = jax.random.split(key, 3)

    outputs = 2
    params = init_params(k_param, outputs=outputs, feats=8 * 8)
    w_p, b_p, outputs, feats = prepare_params(params)

    fwd = jax.jit(
        functools.partial(logreg_forward, w_p=w_p, b_p=b_p, outputs=outputs)
    )

    def ref_fwd(xin):  # pure-JAX reference of the PyTorch forward
        logits = xin.reshape(xin.shape[0], -1) @ params["w_fc1"].T + params["b_fc1"]
        return jax.nn.log_softmax(logits, axis=-1)

    # Small shape consistent with the module: fc1 expects 8*8 = 64 features.
    x = jax.random.normal(k_x, (2, 1, 8, 8), jnp.float32)
    out = fwd(x)
    jax.block_until_ready(out)
    assert out.shape == (2, outputs), out.shape
    assert jnp.allclose(out, ref_fwd(x), atol=1e-5)
    assert jnp.allclose(jnp.sum(jnp.exp(out), axis=1), 1.0, atol=1e-4)

    # Also exercise the multi-step grid with a ragged last block (no jnp.pad).
    x_big = jax.random.normal(k_x2, (100, 1, 8, 8), jnp.float32)
    out_big = fwd(x_big)
    jax.block_until_ready(out_big)
    assert out_big.shape == (100, outputs), out_big.shape
    assert jnp.allclose(out_big, ref_fwd(x_big), atol=1e-5)

    print("KERNEL_OK")
</pallas_src>

<mosaic_0001>
module attributes {stable_mosaic.version = 11 : i64} {
  func.func @logreg_kernel(%arg0: i32, %arg1: memref<2x64xf32, #tpu.memory_space<vmem>>, %arg2: memref<64x128xf32, #tpu.memory_space<vmem>>, %arg3: memref<1x128xf32, #tpu.memory_space<vmem>>, %arg4: memref<2x2xf32, #tpu.memory_space<vmem>>) attributes {dimension_semantics = [#tpu.dimension_semantics<parallel>], iteration_bounds = array<i64: 1>, scalar_prefetch = 0 : i64, scratch_operands = 0 : i64, tpu.core_type = #tpu.core_type<tc>, window_params = [{transform_indices = @transform_0, window_bounds = array<i64: 2, 64>}, {pipeline_mode = #tpu.pipeline_mode<synchronous>, transform_indices = @transform_1, window_bounds = array<i64: 64, 128>}, {pipeline_mode = #tpu.pipeline_mode<synchronous>, transform_indices = @transform_2, window_bounds = array<i64: 1, 128>}, {transform_indices = @transform_3, window_bounds = array<i64: 2, 2>}]} {
    %c0 = arith.constant 0 : index
    %c0_0 = arith.constant 0 : index
    %0 = vector.load %arg1[%c0, %c0_0] : memref<2x64xf32, #tpu.memory_space<vmem>>, vector<2x64xf32>
    %c0_1 = arith.constant 0 : index
    %c0_2 = arith.constant 0 : index
    %1 = vector.load %arg2[%c0_1, %c0_2] : memref<64x128xf32, #tpu.memory_space<vmem>>, vector<64x128xf32>
    %cst = arith.constant dense<0.000000e+00> : vector<2x128xf32>
    %2 = tpu.matmul %0, %1, %cst {dimension_numbers = #tpu.dot_dimension_numbers<[1], [0], [0], [1], [0, 0, 1, 1], [], []>} : vector<2x64xf32>, vector<64x128xf32>, vector<2x128xf32> -> vector<2x128xf32>
    %c0_3 = arith.constant 0 : index
    %c0_4 = arith.constant 0 : index
    %3 = vector.load %arg3[%c0_3, %c0_4] : memref<1x128xf32, #tpu.memory_space<vmem>>, vector<1x128xf32>
    %4 = vector.broadcast %3 : vector<1x128xf32> to vector<2x128xf32>
    %5 = arith.addf %2, %4 : vector<2x128xf32>
    %cst_5 = arith.constant dense<0xFF800000> : vector<2xf32>
    %6 = vector.multi_reduction <maximumf>, %5, %cst_5 [1] : vector<2x128xf32> to vector<2xf32>
    %7 = vector.shape_cast %6 : vector<2xf32> to vector<2x1xf32>
    %8 = vector.broadcast %7 : vector<2x1xf32> to vector<2x128xf32>
    %9 = arith.subf %5, %8 : vector<2x128xf32>
    %10 = math.exp %9 : vector<2x128xf32>
    %cst_6 = arith.constant dense<0.000000e+00> : vector<2xf32>
    %11 = vector.multi_reduction <add>, %10, %cst_6 [1] : vector<2x128xf32> to vector<2xf32>
    %12 = vector.shape_cast %11 : vector<2xf32> to vector<2x1xf32>
    %13 = math.log %12 : vector<2x1xf32>
    %14 = vector.broadcast %13 : vector<2x1xf32> to vector<2x128xf32>
    %15 = arith.subf %9, %14 : vector<2x128xf32>
    %16 = vector.extract_strided_slice %15 {offsets = [0, 0], sizes = [2, 2], strides = [1, 1]} : vector<2x128xf32> to vector<2x2xf32>
    %c0_7 = arith.constant 0 : index
    %c0_8 = arith.constant 0 : index
    %17 = vector.load %arg4[%c0_7, %c0_8] : memref<2x2xf32, #tpu.memory_space<vmem>>, vector<2x2xf32>
    tpu.vector_store %arg4[%c0_7, %c0_8], %16 {strides = array<i32>} : memref<2x2xf32, #tpu.memory_space<vmem>>, vector<2x2xf32>,
    return
  }
  func.func @transform_0(%arg0: i32) -> (i32, i32) {
    %c0_i32 = arith.constant 0 : i32
    %c0_i32_0 = arith.constant 0 : i32
    return %arg0, %c0_i32 : i32, i32
  }
  func.func @transform_1(%arg0: i32) -> (i32, i32) {
    %c0_i32 = arith.constant 0 : i32
    %c0_i32_0 = arith.constant 0 : i32
    %c0_i32_1 = arith.constant 0 : i32
    return %c0_i32, %c0_i32_0 : i32, i32
  }
  func.func @transform_2(%arg0: i32) -> (i32, i32) {
    %c0_i32 = arith.constant 0 : i32
    %c0_i32_0 = arith.constant 0 : i32
    %c0_i32_1 = arith.constant 0 : i32
    return %c0_i32, %c0_i32_0 : i32, i32
  }
  func.func @transform_3(%arg0: i32) -> (i32, i32) {
    %c0_i32 = arith.constant 0 : i32
    %c0_i32_0 = arith.constant 0 : i32
    return %arg0, %c0_i32 : i32, i32
  }
}

</mosaic_0001>

<llo_original>
// kernel: logreg_forward.1
$region0: #{logreg_forward.1}
  #allocation0 [shape = 'u32[]', space=smem, size = 0x4, offset = 0x4, fixed_abs, tag = 'smem constant byte address 0x4 - core index']
  #allocation1 [shape = 'u32[72,128]{1,0:T(1,128)}', space=vmem, size = 0x9000, scoped, tag = 'internal scratch']
  %s0 = inlined_call_operand.vmem [shape: f32[2,64], index: 0, kind: input, shape index: {}]
  %s1 = inlined_call_operand.hbm [shape: f32[64,128], index: 1, kind: input, shape index: {}]
  %s2 = inlined_call_operand.vmem [shape: f32[1,128], index: 2, kind: input, shape index: {}]
  %s3 = inlined_call_operand.hbm [shape: f32[2,2], index: 3, kind: output, shape index: {}]
  %s4 = sld [smem:[#allocation0]]
  $region26: #{logreg_forward.1} parent=0
    _
  %s6 = ssub.s32 1, %s4
  %s7 = scalar_select 0, %s6, %s4
  $region1: #{logreg_forward.1} parent=0
    #allocation2 [shape = 'u8[32768]{0}', space=vmem, size = 0x8000, scoped, tag = 'input window, operand 1, single buffered']
    #allocation3 [shape = 's32[1]{0}', space=sflag, size = 0x4, scoped, tag = 'scoped memory for logreg_forward.1']
    #allocation4 [shape = 's32[1]{0}', space=sflag, size = 0x4, scoped, tag = 'scoped memory for logreg_forward.1']
    #allocation5 [shape = 'u8[1024]{0}', space=vmem, size = 0x400, scoped, tag = 'output window, operand 0, single buffered']
    %8 = vsyncpa [#allocation3], 0
    %9 = vsyncpa [#allocation4], 0
    // Predicated region
    $region2: #{logreg_forward.1} parent=1 // pred_check
      _
    $region3: #{logreg_forward.1} parent=1 // pred_check_branch
      %11 = sbr.rel (0) target = $region5
    $region4: #{logreg_forward.1} parent=1 // pred_region
      _
    $region5: #{logreg_forward.1} parent=1 // pred_fallthru
      _
    // Predicated region
    $region6: #{logreg_forward.1} parent=1 // pred_check
      _
    $region7: #{logreg_forward.1} parent=1 // pred_check_branch
      %13 = sbr.rel (0) target = $region9
    $region8: #{logreg_forward.1} parent=1 // pred_region
      %15 = vsyncadd [#allocation3], 0
      %s16 = sshll.u32 %s1, 4
      %s17 = int_to_ptr.hbm [resolvable:$true] %s16
      %s18 = sshll.u32 [#allocation2], 4
      %s19 = int_to_ptr.vmem [resolvable:$true] %s18
      %24 = dma.hbm_to_vmem [thread:$0]  %s17, 1024, %s19, [#allocation3], 128, 128, 8
    $region9: #{logreg_forward.1} parent=1 // pred_fallthru
      _
    // Predicated region
    $region10: #{logreg_forward.1} parent=1 // pred_check
      _
    $region11: #{logreg_forward.1} parent=1 // pred_check_branch
      %26 = sbr.rel (0) target = $region13
    $region12: #{logreg_forward.1} parent=1 // pred_region
      _
    $region13: #{logreg_forward.1} parent=1 // pred_fallthru
      _
    // Predicated region
    $region14: #{logreg_forward.1} parent=1 // pred_check
      _
    $region15: #{logreg_forward.1} parent=1 // pred_check_branch
      %28 = sbr.rel (0) target = $region17
    $region16: #{logreg_forward.1} parent=1 // pred_region
      %30 = dma.done [#allocation3], 1024
    $region17: #{logreg_forward.1} parent=1 // pred_fallthru
      _
    %v31 = vld [vmem:[%s0] sm:$0x3]
    %v32 = vld [vmem:[#allocation2] sm:$0xff]
    %v33 = vld [vmem:[#allocation2 + $0x8] sm:$0xff]
    %v34 = vld [vmem:[#allocation2 + $0x10] sm:$0xff]
    %v35 = vld [vmem:[#allocation2 + $0x18] sm:$0xff]
    %v36 = vld [vmem:[#allocation2 + $0x20] sm:$0xff]
    %v37 = vld [vmem:[#allocation2 + $0x28] sm:$0xff]
    %v38 = vld [vmem:[#allocation2 + $0x30] sm:$0xff]
    %v39 = vld [vmem:[#allocation2 + $0x38] sm:$0xff]
    %v40 = vld [vmem:[%s2] sm:$0x1]
    %v42 = vperm.slane %v40, 0
    %vm44 = vcmask 523264
    %v46 = vsel %vm44, %v31, 0
    %48 = vmatpush.msra.mxu0 0.0
    %49 = vmatpush.msra.mxu0 0.0
    %50 = vmatpush.msra.mxu0 0.0
    %51 = vmatpush.msra.mxu0 0.0
    %52 = vmatpush.msra.mxu0 0.0
    %53 = vmatpush.msra.mxu0 0.0
    %54 = vmatpush.msra.mxu0 0.0
    %55 = vmatpush.msra.mxu0 0.0
    %56 = vmatpush.msra.mxu0 %v39
    %57 = vmatpush.msra.mxu0 %v38
    %58 = vmatpush.msra.mxu0 %v37
    %59 = vmatpush.msra.mxu0 %v36
    %60 = vmatpush.msra.mxu0 %v35
    %61 = vmatpush.msra.mxu0 %v34
    %62 = vmatpush.msra.mxu0 %v33
    %63 = vmatpush.msra.mxu0 %v32
    %64 = vmatmul.f32.gmra.mxu0 %v46
    %v65 = vpop.f32.mrf.mxu0
    %v66 = vadd.f32 %v42, %v65
    %67 = vdwg.mxu0
    %vm68 = vcmask 1041408
    %v69 = vsel %vm68, %v66, -inf
    %70 = vmax.xlane.f32.xlu0 %v69
    %v71 = vpop.xlane.xlu0 %70
    %v72 = vsub.f32 %v66, %v71
    %v73 = vmul.f32 %v72, 1.442695
    %v74 = vpow.pop %v73
    %v75 = vsel %vm68, %v74, 0.0
    %76 = vadd.xlane.f32.xlu0 %v75
    %v77 = vpop.xlane.xlu0 %76
    %v78 = vlog2.pop %v77
    %v79 = vmul.f32 %v78, 0.6931472
    %v80 = vsub.f32 %v72, %v79
    %vm81 = vcmask 9216
    %82 = vst.msk [vmem:[#allocation5] sm:$0x3] %vm81, %v80
    // Predicated region
    $region18: #{logreg_forward.1} parent=1 // pred_check
      _
    $region19: #{logreg_forward.1} parent=1 // pred_check_branch
      %84 = sbr.rel (0) target = $region21
    $region20: #{logreg_forward.1} parent=1 // pred_region
      %86 = vsyncadd [#allocation4], 0
      %s88 = sshll.u32 [#allocation5], 4
      %s89 = int_to_ptr.vmem [resolvable:$true] %s88
      %s90 = sshll.u32 %s3, 4
      %s91 = int_to_ptr.hbm [resolvable:$true] %s90
      %93 = dma.vmem_to_hbm [thread:$0]  %s89, 32, %s91, [#allocation4]
    $region21: #{logreg_forward.1} parent=1 // pred_fallthru
      _
    // Predicated region
    $region22: #{logreg_forward.1} parent=1 // pred_check
      _
    $region23: #{logreg_forward.1} parent=1 // pred_check_branch
      %95 = sbr.rel (0) target = $region25
    $region24: #{logreg_forward.1} parent=1 // pred_region
      %97 = dma.done [#allocation4], 32
    $region25: #{logreg_forward.1} parent=1 // pred_fallthru
      _
    %98 = vsyncpa [#allocation3], 1
    %99 = vsyncpa [#allocation4], 1

</llo_original>
